<compile_context>
chip_gen: v6e
topology: v6e:2x2x1
jax: 0.10.0
libtpu: 0.0.40
codegen_flags: <defaults>
</compile_context>

<pallas_src>
import functools

import jax
import jax.numpy as jnp
from jax.experimental import pallas as pl
from jax.experimental.pallas import tpu as pltpu


_HIDDEN = 256
_BN_EPS = 1e-5


def _round_up(x, m):
    return (x + m - 1) // m * m


def _cdiv(a, b):
    return -(-a // b)


# ----------------------------------------------------------------------------
# Kernel 1: h = x @ w1 (bf16 MXU operands, f32 accumulation directly in the
# VMEM-resident output block) over a (batch tiles, K tiles) grid, plus
# per-batch-tile column sum / sum-of-squares of h for training-mode BatchNorm.
# ----------------------------------------------------------------------------
def _hidden_stats_kernel(x_ref, w1_ref, h_ref, stats_ref):
    k = pl.program_id(1)

    prod = jnp.dot(
        x_ref[...].astype(jnp.bfloat16),
        w1_ref[...].astype(jnp.bfloat16),
        preferred_element_type=jnp.float32,
    )

    @pl.when(k == 0)
    def _first():
        h_ref[...] = prod

    @pl.when(k > 0)
    def _accum():
        h_ref[...] += prod

    @pl.when(k == pl.num_programs(1) - 1)
    def _finalize():
        h = h_ref[...]
        # Padded (all-zero) batch rows contribute nothing; kernel 2 divides by
        # the true batch size when finalizing mean/var.
        stats_ref[0, 0:1, :] = jnp.sum(h, axis=0, keepdims=True)
        stats_ref[0, 1:2, :] = jnp.sum(h * h, axis=0, keepdims=True)


# ----------------------------------------------------------------------------
# Kernel 2: in-kernel BN finalize + fused-affine BatchNorm + ReLU, then
#   features = relu(bn(h)) @ w2[:, :256]   (256x256 MXU matmul, bf16 operands)
#   u        = w2[:, 256]^T  contracted against relu(bn(h)) -> lane-major (1,TB)
# ----------------------------------------------------------------------------
def _bn_head_kernel(h_ref, stats_ref, gb_ref, w2f_ref, w2u_ref,
                    feat_ref, u_ref, *, inv_b):
    # Finalize the batch statistics (tiny 256-wide VPU/EUP work, done per tile).
    st = jnp.sum(stats_ref[...], axis=0)            # (2, 256): [sum, sum_sq]
    mean = st[0:1, :] * inv_b                        # (1, 256)
    var = jnp.maximum(st[1:2, :] * inv_b - mean * mean, 0.0)   # biased, as torch
    scale = gb_ref[0:1, :] * jax.lax.rsqrt(var + _BN_EPS)       # gamma * rsqrt
    shift = gb_ref[1:2, :] - mean * scale                       # beta - mean*a

    hn = jnp.maximum(h_ref[...] * scale + shift, 0.0)           # (TB, 256) f32
    hn_b = hn.astype(jnp.bfloat16)

    feat_ref[...] = jnp.dot(
        hn_b, w2f_ref[...], preferred_element_type=jnp.float32
    ).astype(feat_ref.dtype)

    # u: contract hn's 256 axis against w2's last column, result comes out
    # (1, TB) lane-major; broadcast to 8 sublanes for a dense, unmasked store.
    u_row = jax.lax.dot_general(
        w2u_ref[...], hn_b,
        dimension_numbers=(((1,), (1,)), ((), ())),
        preferred_element_type=jnp.float32,
    )                                                # (1, TB)
    u_ref[...] = jnp.broadcast_to(u_row, u_ref.shape)   # (8, TB)


def full_model_forward(masked_batch, params, mode=1):
    """masked_batch: (B, n_dims, w_size) float32."""
    B = masked_batch.shape[0]

    # R, T, E are identity submodules in this instantiation.
    r_output = masked_batch

    # nn.Flatten (row-major, matching PyTorch).
    x_flat = masked_batch.reshape(B, -1)
    d_in = x_flat.shape[1]

    w1 = params["w1"]        # (d_in, 256)  == torch linear.weight.T
    gamma = params["gamma"]  # (256,)
    beta = params["beta"]    # (256,)
    w2 = params["w2"]        # (256, 257)   == torch linear1.weight.T
    # NOTE: params["b1"] (Linear bias) intentionally unused: train-mode
    # BatchNorm subtracts the batch mean, cancelling a constant bias exactly.

    # ---- tiling -------------------------------------------------------------
    TB = min(512, _round_up(B, 16))          # batch tile (bf16 sublane packing)
    n_tb = _cdiv(B, TB)
    if n_tb == 1 and B > 128:
        # v7x has 2 TensorCores: make at least two batch tiles so the
        # "parallel" axis can be split across cores (free on v5e/v6e).
        TB = _round_up(_cdiv(B, 2), 16)
        n_tb = _cdiv(B, TB)
    b_pad = n_tb * TB

    d_pad128 = _round_up(d_in, 128)
    TK = d_pad128 if d_pad128 <= 2048 else 512   # big K tiles -> big DMAs
    d_pad = _round_up(d_in, TK)
    n_tk = d_pad // TK

    # ---- operand prep: keep x f32 (read once); bf16 only what is re-read ----
    if (b_pad, d_pad) != (B, d_in):
        x_p = jnp.pad(x_flat, ((0, b_pad - B), (0, d_pad - d_in)))
    else:
        x_p = x_flat
    w1_p = jnp.pad(w1, ((0, d_pad - d_in), (0, 0))) if d_pad != d_in else w1
    if n_tb > 1:
        w1_p = w1_p.astype(jnp.bfloat16)     # re-streamed once per batch tile
    w2f = w2[:, :_HIDDEN].astype(jnp.bfloat16)                     # (256, 256)
    w2u = w2[:, _HIDDEN:].reshape(1, _HIDDEN).astype(jnp.bfloat16)  # (1, 256)
    gb = jnp.stack([gamma, beta], axis=0).astype(jnp.float32)       # (2, 256)

    w1_bytes = 2 if n_tb > 1 else 4
    vmem_k1 = (2 * TB * TK * 4                     # x blocks (f32), 2x buffered
               + 2 * TK * _HIDDEN * w1_bytes       # w1 blocks
               + 2 * TB * _HIDDEN * 4              # resident h output blocks
               + 2 * 2 * _HIDDEN * 4)              # stats blocks
    vmem_limit = int(min(max(2 * vmem_k1, 16 << 20), 32 << 20))

    # ---- kernel 1: hidden activations + per-tile BN statistics --------------
    h_pad, stats = pl.pallas_call(
        _hidden_stats_kernel,
        out_shape=(
            jax.ShapeDtypeStruct((b_pad, _HIDDEN), jnp.float32),
            jax.ShapeDtypeStruct((n_tb, 2, _HIDDEN), jnp.float32),
        ),
        grid=(n_tb, n_tk),
        in_specs=[
            pl.BlockSpec((TB, TK), lambda i, k: (i, k)),
            pl.BlockSpec((TK, _HIDDEN), lambda i, k: (k, 0)),
        ],
        out_specs=(
            pl.BlockSpec((TB, _HIDDEN), lambda i, k: (i, 0)),
            pl.BlockSpec((1, 2, _HIDDEN), lambda i, k: (i, 0, 0)),
        ),
        compiler_params=pltpu.CompilerParams(
            dimension_semantics=("parallel", "arbitrary"),
            vmem_limit_bytes=vmem_limit,
        ),
        cost_estimate=pl.CostEstimate(
            flops=2 * b_pad * d_pad * _HIDDEN,
            transcendentals=0,
            bytes_accessed=(b_pad * d_pad * 4
                            + n_tb * d_pad * _HIDDEN * w1_bytes
                            + b_pad * _HIDDEN * 4
                            + n_tb * 2 * _HIDDEN * 4),
        ),
    )(x_p, w1_p)

    # ---- kernel 2: in-kernel BN finalize + BN + ReLU + output head ----------
    feat_pad, u_rows = pl.pallas_call(
        functools.partial(_bn_head_kernel, inv_b=1.0 / B),
        out_shape=(
            jax.ShapeDtypeStruct((b_pad, _HIDDEN), jnp.float32),
            jax.ShapeDtypeStruct((n_tb, 8, TB), jnp.float32),
        ),
        grid=(n_tb,),
        in_specs=[
            pl.BlockSpec((TB, _HIDDEN), lambda i: (i, 0)),
            pl.BlockSpec((n_tb, 2, _HIDDEN), lambda i: (0, 0, 0)),
            pl.BlockSpec((2, _HIDDEN), lambda i: (0, 0)),
            pl.BlockSpec((_HIDDEN, _HIDDEN), lambda i: (0, 0)),
            pl.BlockSpec((1, _HIDDEN), lambda i: (0, 0)),
        ],
        out_specs=(
            pl.BlockSpec((TB, _HIDDEN), lambda i: (i, 0)),
            pl.BlockSpec((None, 8, TB), lambda i: (i, 0, 0)),
        ),
        compiler_params=pltpu.CompilerParams(
            dimension_semantics=("parallel",),
        ),
        cost_estimate=pl.CostEstimate(
            flops=2 * b_pad * _HIDDEN * (_HIDDEN + 1) + 6 * b_pad * _HIDDEN,
            transcendentals=n_tb * _HIDDEN,
            bytes_accessed=(b_pad * _HIDDEN * 4
                            + n_tb * (n_tb * 2 * _HIDDEN * 4)
                            + _HIDDEN * _HIDDEN * 2
                            + b_pad * _HIDDEN * 4
                            + n_tb * 8 * TB * 4),
        ),
    )(h_pad, stats, gb, w2f, w2u)

    features = feat_pad[:B]
    u = u_rows[:, 0, :].reshape(b_pad, 1)[:B]

    if mode == 1:
        return r_output, features, u
    elif mode == 2:
        return features, u
    raise ValueError(f"unsupported mode: {mode}")


def init_params(key, n_dims, w_size):
    """Synthetic, deterministic params in kernel-friendly (input-major) layout."""
    d_in = n_dims * w_size
    k1, k2, k3 = jax.random.split(key, 3)
    w1 = jax.random.uniform(k1, (d_in, _HIDDEN), jnp.float32,
                            minval=-1.0, maxval=1.0) / jnp.sqrt(float(d_in))
    b1 = jax.random.uniform(k2, (_HIDDEN,), jnp.float32,
                            minval=-1.0, maxval=1.0) / jnp.sqrt(float(d_in))
    w2 = jax.random.uniform(k3, (_HIDDEN, _HIDDEN + 1), jnp.float32,
                            minval=-1.0, maxval=1.0) / jnp.sqrt(float(_HIDDEN))
    gamma = jnp.ones((_HIDDEN,), jnp.float32)   # BatchNorm1d default weight
    beta = jnp.zeros((_HIDDEN,), jnp.float32)   # BatchNorm1d default bias
    return {"w1": w1, "b1": b1, "gamma": gamma, "beta": beta, "w2": w2}


def _reference_forward(masked_batch, params):
    """Pure-JAX reference of the PyTorch forward (train-mode BN, with b1)."""
    B = masked_batch.shape[0]
    x = masked_batch.reshape(B, -1)
    h = x @ params["w1"] + params["b1"]
    mean = jnp.mean(h, axis=0, keepdims=True)
    var = jnp.mean((h - mean) ** 2, axis=0, keepdims=True)
    hn = (h - mean) * jax.lax.rsqrt(var + _BN_EPS) * params["gamma"] + params["beta"]
    hn = jnp.maximum(hn, 0.0)
    y = hn @ params["w2"]
    return masked_batch, y[:, :_HIDDEN], y[:, _HIDDEN:]


if __name__ == "__main__":
    # Small shapes consistent with the module: n_dims * w_size feeds Linear(-, 256).
    B, n_dims, w_size = 8, 4, 16
    key = jax.random.PRNGKey(0)
    k_x, k_p = jax.random.split(key)
    masked_batch = jax.random.normal(k_x, (B, n_dims, w_size), jnp.float32)
    params = init_params(k_p, n_dims, w_size)

    forward = jax.jit(full_model_forward, static_argnames=("mode",))
    r_output, features, u = forward(masked_batch, params, mode=1)
    jax.block_until_ready((r_output, features, u))

    assert r_output.shape == (B, n_dims, w_size)
    assert features.shape == (B, _HIDDEN)
    assert u.shape == (B, 1)
    assert bool(jnp.all(jnp.isfinite(features))) and bool(jnp.all(jnp.isfinite(u)))

    r_ref, f_ref, u_ref = _reference_forward(masked_batch, params)
    assert bool(jnp.all(r_output == r_ref))
    assert float(jnp.max(jnp.abs(features - f_ref))) < 8e-2   # bf16 MXU tolerance
    assert float(jnp.max(jnp.abs(u - u_ref))) < 8e-2
    print("KERNEL_OK")
</pallas_src>

<mosaic_0001>
module attributes {stable_mosaic.version = 11 : i64} {
  func.func @_hidden_stats_kernel(%arg0: i32, %arg1: i32, %arg2: memref<16x128xf32, #tpu.memory_space<vmem>>, %arg3: memref<128x256xf32, #tpu.memory_space<vmem>>, %arg4: memref<16x256xf32, #tpu.memory_space<vmem>>, %arg5: memref<1x2x256xf32, #tpu.memory_space<vmem>>) attributes {dimension_semantics = [#tpu.dimension_semantics<parallel>, #tpu.dimension_semantics<arbitrary>], iteration_bounds = array<i64: 1, 1>, scalar_prefetch = 0 : i64, scratch_operands = 0 : i64, tpu.core_type = #tpu.core_type<tc>, window_params = [{transform_indices = @transform_0, window_bounds = array<i64: 16, 128>}, {transform_indices = @transform_1, window_bounds = array<i64: 128, 256>}, {transform_indices = @transform_2, window_bounds = array<i64: 16, 256>}, {transform_indices = @transform_3, window_bounds = array<i64: 1, 2, 256>}]} {
    %c0 = arith.constant 0 : index
    %c0_0 = arith.constant 0 : index
    %0 = vector.load %arg2[%c0, %c0_0] : memref<16x128xf32, #tpu.memory_space<vmem>>, vector<16x128xf32>
    %1 = arith.truncf %0 : vector<16x128xf32> to vector<16x128xbf16>
    %c0_1 = arith.constant 0 : index
    %c0_2 = arith.constant 0 : index
    %2 = vector.load %arg3[%c0_1, %c0_2] : memref<128x256xf32, #tpu.memory_space<vmem>>, vector<128x256xf32>
    %3 = arith.truncf %2 : vector<128x256xf32> to vector<128x256xbf16>
    %cst = arith.constant dense<0.000000e+00> : vector<16x256xf32>
    %4 = tpu.matmul %1, %3, %cst {dimension_numbers = #tpu.dot_dimension_numbers<[1], [0], [0], [1], [0, 0, 1, 1], [], []>} : vector<16x128xbf16>, vector<128x256xbf16>, vector<16x256xf32> -> vector<16x256xf32>
    %c0_i32 = arith.constant 0 : i32
    %5 = arith.cmpi eq, %arg1, %c0_i32 : i32
    %6 = arith.extui %5 : i1 to i32
    %c0_i32_3 = arith.constant 0 : i32
    %7 = arith.cmpi ne, %6, %c0_i32_3 : i32
    scf.if %7 {
      %c0_8 = arith.constant 0 : index
      %c0_9 = arith.constant 0 : index
      %14 = vector.load %arg4[%c0_8, %c0_9] : memref<16x256xf32, #tpu.memory_space<vmem>>, vector<16x256xf32>
      tpu.vector_store %arg4[%c0_8, %c0_9], %4 {strides = array<i32>} : memref<16x256xf32, #tpu.memory_space<vmem>>, vector<16x256xf32>,
    } else {
    }
    %c0_i32_4 = arith.constant 0 : i32
    %8 = arith.cmpi sgt, %arg1, %c0_i32_4 : i32
    %9 = arith.extui %8 : i1 to i32
    %c0_i32_5 = arith.constant 0 : i32
    %10 = arith.cmpi ne, %9, %c0_i32_5 : i32
    scf.if %10 {
      %c0_8 = arith.constant 0 : index
      %c0_9 = arith.constant 0 : index
      %14 = vector.load %arg4[%c0_8, %c0_9] : memref<16x256xf32, #tpu.memory_space<vmem>>, vector<16x256xf32>
      %15 = arith.addf %14, %4 : vector<16x256xf32>
      %c0_10 = arith.constant 0 : index
      %c0_11 = arith.constant 0 : index
      %16 = vector.load %arg4[%c0_10, %c0_11] : memref<16x256xf32, #tpu.memory_space<vmem>>, vector<16x256xf32>
      tpu.vector_store %arg4[%c0_10, %c0_11], %15 {strides = array<i32>} : memref<16x256xf32, #tpu.memory_space<vmem>>, vector<16x256xf32>,
    } else {
    }
    %c0_i32_6 = arith.constant 0 : i32
    %11 = arith.cmpi eq, %arg1, %c0_i32_6 : i32
    %12 = arith.extui %11 : i1 to i32
    %c0_i32_7 = arith.constant 0 : i32
    %13 = arith.cmpi ne, %12, %c0_i32_7 : i32
    scf.if %13 {
      %c0_8 = arith.constant 0 : index
      %c0_9 = arith.constant 0 : index
      %14 = vector.load %arg4[%c0_8, %c0_9] : memref<16x256xf32, #tpu.memory_space<vmem>>, vector<16x256xf32>
      %cst_10 = arith.constant dense<0.000000e+00> : vector<256xf32>
      %15 = vector.multi_reduction <add>, %14, %cst_10 [0] : vector<16x256xf32> to vector<256xf32>
      %16 = vector.shape_cast %15 : vector<256xf32> to vector<1x256xf32>
      %c0_11 = arith.constant 0 : index
      %c0_12 = arith.constant 0 : index
      %c0_13 = arith.constant 0 : index
      %17 = vector.load %arg5[%c0_11, %c0_12, %c0_13] : memref<1x2x256xf32, #tpu.memory_space<vmem>>, vector<1x1x256xf32>
      %18 = vector.shape_cast %17 : vector<1x1x256xf32> to vector<1x256xf32>
      %19 = vector.shape_cast %16 : vector<1x256xf32> to vector<1x1x256xf32>
      tpu.vector_store %arg5[%c0_11, %c0_12, %c0_13], %19 {strides = array<i32>} : memref<1x2x256xf32, #tpu.memory_space<vmem>>, vector<1x1x256xf32>,
      %20 = arith.mulf %14, %14 : vector<16x256xf32>
      %cst_14 = arith.constant dense<0.000000e+00> : vector<256xf32>
      %21 = vector.multi_reduction <add>, %20, %cst_14 [0] : vector<16x256xf32> to vector<256xf32>
      %22 = vector.shape_cast %21 : vector<256xf32> to vector<1x256xf32>
      %c0_15 = arith.constant 0 : index
      %c1 = arith.constant 1 : index
      %c0_16 = arith.constant 0 : index
      %23 = vector.load %arg5[%c0_15, %c1, %c0_16] : memref<1x2x256xf32, #tpu.memory_space<vmem>>, vector<1x1x256xf32>
      %24 = vector.shape_cast %23 : vector<1x1x256xf32> to vector<1x256xf32>
      %25 = vector.shape_cast %22 : vector<1x256xf32> to vector<1x1x256xf32>
      tpu.vector_store %arg5[%c0_15, %c1, %c0_16], %25 {strides = array<i32>} : memref<1x2x256xf32, #tpu.memory_space<vmem>>, vector<1x1x256xf32>,
    } else {
    }
    return
  }
  func.func @transform_0(%arg0: i32, %arg1: i32) -> (i32, i32) {
    %c0_i32 = arith.constant 0 : i32
    return %arg0, %arg1 : i32, i32
  }
  func.func @transform_1(%arg0: i32, %arg1: i32) -> (i32, i32) {
    %c0_i32 = arith.constant 0 : i32
    %c0_i32_0 = arith.constant 0 : i32
    return %arg1, %c0_i32 : i32, i32
  }
  func.func @transform_2(%arg0: i32, %arg1: i32) -> (i32, i32) {
    %c0_i32 = arith.constant 0 : i32
    %c0_i32_0 = arith.constant 0 : i32
    return %arg0, %c0_i32 : i32, i32
  }
  func.func @transform_3(%arg0: i32, %arg1: i32) -> (i32, i32, i32) {
    %c0_i32 = arith.constant 0 : i32
    %c0_i32_0 = arith.constant 0 : i32
    %c0_i32_1 = arith.constant 0 : i32
    return %arg0, %c0_i32, %c0_i32_0 : i32, i32, i32
  }
}

module attributes {stable_mosaic.version = 11 : i64} {
  func.func @_bn_head_kernel(%arg0: i32, %arg1: memref<16x256xf32, #tpu.memory_space<vmem>>, %arg2: memref<1x2x256xf32, #tpu.memory_space<vmem>>, %arg3: memref<2x256xf32, #tpu.memory_space<vmem>>, %arg4: memref<256x256xbf16, #tpu.memory_space<vmem>>, %arg5: memref<1x256xbf16, #tpu.memory_space<vmem>>, %arg6: memref<16x256xf32, #tpu.memory_space<vmem>>, %arg7: memref<1x8x16xf32, #tpu.memory_space<vmem>>) attributes {dimension_semantics = [#tpu.dimension_semantics<parallel>], iteration_bounds = array<i64: 1>, scalar_prefetch = 0 : i64, scratch_operands = 0 : i64, tpu.core_type = #tpu.core_type<tc>, window_params = [{transform_indices = @transform_0, window_bounds = array<i64: 16, 256>}, {pipeline_mode = #tpu.pipeline_mode<synchronous>, transform_indices = @transform_1, window_bounds = array<i64: 1, 2, 256>}, {pipeline_mode = #tpu.pipeline_mode<synchronous>, transform_indices = @transform_2, window_bounds = array<i64: 2, 256>}, {pipeline_mode = #tpu.pipeline_mode<synchronous>, transform_indices = @transform_3, window_bounds = array<i64: 256, 256>}, {pipeline_mode = #tpu.pipeline_mode<synchronous>, transform_indices = @transform_4, window_bounds = array<i64: 1, 256>}, {transform_indices = @transform_5, window_bounds = array<i64: 16, 256>}, {transform_indices = @transform_6, window_bounds = array<i64: 1, 8, 16>}]} {
    %c0 = arith.constant 0 : index
    %c0_0 = arith.constant 0 : index
    %c0_1 = arith.constant 0 : index
    %0 = vector.load %arg2[%c0, %c0_0, %c0_1] : memref<1x2x256xf32, #tpu.memory_space<vmem>>, vector<1x2x256xf32>
    %cst = arith.constant dense<0.000000e+00> : vector<2x256xf32>
    %1 = vector.multi_reduction <add>, %0, %cst [0] : vector<1x2x256xf32> to vector<2x256xf32>
    %2 = vector.extract_strided_slice %1 {offsets = [0, 0], sizes = [1, 256], strides = [1, 1]} : vector<2x256xf32> to vector<1x256xf32>
    %cst_2 = arith.constant 1.250000e-01 : f32
    %3 = vector.broadcast %cst_2 : f32 to vector<1x256xf32>
    %4 = arith.mulf %2, %3 : vector<1x256xf32>
    %5 = vector.extract_strided_slice %1 {offsets = [1, 0], sizes = [1, 256], strides = [1, 1]} : vector<2x256xf32> to vector<1x256xf32>
    %cst_3 = arith.constant 1.250000e-01 : f32
    %6 = vector.broadcast %cst_3 : f32 to vector<1x256xf32>
    %7 = arith.mulf %5, %6 : vector<1x256xf32>
    %8 = arith.mulf %4, %4 : vector<1x256xf32>
    %9 = arith.subf %7, %8 : vector<1x256xf32>
    %cst_4 = arith.constant 0.000000e+00 : f32
    %10 = vector.broadcast %cst_4 : f32 to vector<1x256xf32>
    %11 = arith.maximumf %9, %10 : vector<1x256xf32>
    %c0_5 = arith.constant 0 : index
    %c0_6 = arith.constant 0 : index
    %12 = vector.load %arg3[%c0_5, %c0_6] : memref<2x256xf32, #tpu.memory_space<vmem>>, vector<1x256xf32>
    %cst_7 = arith.constant 9.99999974E-6 : f32
    %13 = vector.broadcast %cst_7 : f32 to vector<1x256xf32>
    %14 = arith.addf %11, %13 : vector<1x256xf32>
    %15 = math.rsqrt %14 : vector<1x256xf32>
    %16 = arith.mulf %12, %15 : vector<1x256xf32>
    %c1 = arith.constant 1 : index
    %c0_8 = arith.constant 0 : index
    %17 = vector.load %arg3[%c1, %c0_8] : memref<2x256xf32, #tpu.memory_space<vmem>>, vector<1x256xf32>
    %18 = arith.mulf %4, %16 : vector<1x256xf32>
    %19 = arith.subf %17, %18 : vector<1x256xf32>
    %c0_9 = arith.constant 0 : index
    %c0_10 = arith.constant 0 : index
    %20 = vector.load %arg1[%c0_9, %c0_10] : memref<16x256xf32, #tpu.memory_space<vmem>>, vector<16x256xf32>
    %21 = vector.broadcast %16 : vector<1x256xf32> to vector<16x256xf32>
    %22 = arith.mulf %20, %21 : vector<16x256xf32>
    %23 = vector.broadcast %19 : vector<1x256xf32> to vector<16x256xf32>
    %24 = arith.addf %22, %23 : vector<16x256xf32>
    %cst_11 = arith.constant 0.000000e+00 : f32
    %25 = vector.broadcast %cst_11 : f32 to vector<16x256xf32>
    %26 = arith.maximumf %24, %25 : vector<16x256xf32>
    %27 = arith.truncf %26 : vector<16x256xf32> to vector<16x256xbf16>
    %c0_12 = arith.constant 0 : index
    %c0_13 = arith.constant 0 : index
    %28 = vector.load %arg4[%c0_12, %c0_13] : memref<256x256xbf16, #tpu.memory_space<vmem>>, vector<256x256xbf16>
    %cst_14 = arith.constant dense<0.000000e+00> : vector<16x256xf32>
    %29 = tpu.matmul %27, %28, %cst_14 {dimension_numbers = #tpu.dot_dimension_numbers<[1], [0], [0], [1], [0, 0, 1, 1], [], []>} : vector<16x256xbf16>, vector<256x256xbf16>, vector<16x256xf32> -> vector<16x256xf32>
    %c0_15 = arith.constant 0 : index
    %c0_16 = arith.constant 0 : index
    %30 = vector.load %arg6[%c0_15, %c0_16] : memref<16x256xf32, #tpu.memory_space<vmem>>, vector<16x256xf32>
    tpu.vector_store %arg6[%c0_15, %c0_16], %29 {strides = array<i32>} : memref<16x256xf32, #tpu.memory_space<vmem>>, vector<16x256xf32>,
    %c0_17 = arith.constant 0 : index
    %c0_18 = arith.constant 0 : index
    %31 = vector.load %arg5[%c0_17, %c0_18] : memref<1x256xbf16, #tpu.memory_space<vmem>>, vector<1x256xbf16>
    %cst_19 = arith.constant dense<0.000000e+00> : vector<1x16xf32>
    %32 = tpu.matmul %31, %27, %cst_19 {dimension_numbers = #tpu.dot_dimension_numbers<[1], [1], [0], [0], [0, 0, 1, 0], [], []>} : vector<1x256xbf16>, vector<16x256xbf16>, vector<1x16xf32> -> vector<1x16xf32>
    %33 = vector.shape_cast %32 : vector<1x16xf32> to vector<1x16xf32>
    %34 = vector.broadcast %33 : vector<1x16xf32> to vector<8x16xf32>
    %c0_20 = arith.constant 0 : index
    %c0_21 = arith.constant 0 : index
    %c0_22 = arith.constant 0 : index
    %35 = vector.load %arg7[%c0_20, %c0_21, %c0_22] : memref<1x8x16xf32, #tpu.memory_space<vmem>>, vector<1x8x16xf32>
    %36 = vector.shape_cast %35 : vector<1x8x16xf32> to vector<8x16xf32>
    %37 = vector.shape_cast %34 : vector<8x16xf32> to vector<1x8x16xf32>
    tpu.vector_store %arg7[%c0_20, %c0_21, %c0_22], %37 {strides = array<i32>} : memref<1x8x16xf32, #tpu.memory_space<vmem>>, vector<1x8x16xf32>,
    return
  }
  func.func @transform_0(%arg0: i32) -> (i32, i32) {
    %c0_i32 = arith.constant 0 : i32
    %c0_i32_0 = arith.constant 0 : i32
    return %arg0, %c0_i32 : i32, i32
  }
  func.func @transform_1(%arg0: i32) -> (i32, i32, i32) {
    %c0_i32 = arith.constant 0 : i32
    %c0_i32_0 = arith.constant 0 : i32
    %c0_i32_1 = arith.constant 0 : i32
    %c0_i32_2 = arith.constant 0 : i32
    return %c0_i32, %c0_i32_0, %c0_i32_1 : i32, i32, i32
  }
  func.func @transform_2(%arg0: i32) -> (i32, i32) {
    %c0_i32 = arith.constant 0 : i32
    %c0_i32_0 = arith.constant 0 : i32
    %c0_i32_1 = arith.constant 0 : i32
    return %c0_i32, %c0_i32_0 : i32, i32
  }
  func.func @transform_3(%arg0: i32) -> (i32, i32) {
    %c0_i32 = arith.constant 0 : i32
    %c0_i32_0 = arith.constant 0 : i32
    %c0_i32_1 = arith.constant 0 : i32
    return %c0_i32, %c0_i32_0 : i32, i32
  }
  func.func @transform_4(%arg0: i32) -> (i32, i32) {
    %c0_i32 = arith.constant 0 : i32
    %c0_i32_0 = arith.constant 0 : i32
    %c0_i32_1 = arith.constant 0 : i32
    return %c0_i32, %c0_i32_0 : i32, i32
  }
  func.func @transform_5(%arg0: i32) -> (i32, i32) {
    %c0_i32 = arith.constant 0 : i32
    %c0_i32_0 = arith.constant 0 : i32
    return %arg0, %c0_i32 : i32, i32
  }
  func.func @transform_6(%arg0: i32) -> (i32, i32, i32) {
    %c0_i32 = arith.constant 0 : i32
    %c0_i32_0 = arith.constant 0 : i32
    %c0_i32_1 = arith.constant 0 : i32
    return %arg0, %c0_i32, %c0_i32_0 : i32, i32, i32
  }
}

</mosaic_0001>

<llo_original>
// kernel: full_model_forward.2
$region0: #{full_model_forward.2}
  #allocation0 [shape = 'u32[]', space=smem, size = 0x4, offset = 0x4, fixed_abs, tag = 'smem constant byte address 0x4 - core index']
  #allocation1 [shape = 'u32[144,128]{1,0:T(1,128)}', space=vmem, size = 0x12000, scoped, tag = 'internal scratch']
  %s0 = inlined_call_operand.vmem [shape: f32[16,128], index: 0, kind: input, shape index: {}]
  %s1 = inlined_call_operand.vmem [shape: f32[128,256], index: 1, kind: input, shape index: {}]
  %s2 = inlined_call_operand.vmem [shape: f32[16,256], index: 2, kind: output, shape index: {0}]
  %s3 = inlined_call_operand.vmem [shape: f32[1,2,256], index: 3, kind: output, shape index: {1}]
  %4 = xla_tuple %s2, %s3
  %s5 = sld [smem:[#allocation0]]
  $region38: #{full_model_forward.2} parent=0
    _
  %s7 = ssub.s32 1, %s5
  %s8 = scalar_select 0, %s7, %s5
  // Predicated region
  $region2: #{full_model_forward.2} parent=0 // pred_check
    _
  $region3: #{full_model_forward.2} parent=0 // pred_check_branch
    %10 = sbr.rel (0) target = $region5
  $region4: #{full_model_forward.2} parent=0 // pred_region
    _
  $region5: #{full_model_forward.2} parent=0 // pred_fallthru
    _
  // Predicated region
  $region6: #{full_model_forward.2} parent=0 // pred_check
    _
  $region7: #{full_model_forward.2} parent=0 // pred_check_branch
    %12 = sbr.rel (0) target = $region9
  $region8: #{full_model_forward.2} parent=0 // pred_region
    _
  $region9: #{full_model_forward.2} parent=0 // pred_fallthru
    _
  %v14 = vld [vmem:[%s0] sm:$0xff]
  %v15 = vld [vmem:[%s0 + $0x8] sm:$0xff]
  %v16 = vpack.c.bf16 %v15, %v14
  %v17 = vld [vmem:[%s1] sm:$0xff]
  %v18 = vld [vmem:[%s1 + $0x8] sm:$0xff]
  %v19 = vld [vmem:[%s1 + $0x10] sm:$0xff]
  %v20 = vld [vmem:[%s1 + $0x18] sm:$0xff]
  %v21 = vld [vmem:[%s1 + $0x20] sm:$0xff]
  %v22 = vld [vmem:[%s1 + $0x28] sm:$0xff]
  %v23 = vld [vmem:[%s1 + $0x30] sm:$0xff]
  %v24 = vld [vmem:[%s1 + $0x38] sm:$0xff]
  %v25 = vld [vmem:[%s1 + $0x40] sm:$0xff]
  %v26 = vld [vmem:[%s1 + $0x48] sm:$0xff]
  %v27 = vld [vmem:[%s1 + $0x50] sm:$0xff]
  %v28 = vld [vmem:[%s1 + $0x58] sm:$0xff]
  %v29 = vld [vmem:[%s1 + $0x60] sm:$0xff]
  %v30 = vld [vmem:[%s1 + $0x68] sm:$0xff]
  %v31 = vld [vmem:[%s1 + $0x70] sm:$0xff]
  %v32 = vld [vmem:[%s1 + $0x78] sm:$0xff]
  %v33 = vld [vmem:[%s1 + $0x80] sm:$0xff]
  %v34 = vld [vmem:[%s1 + $0x88] sm:$0xff]
  %v35 = vld [vmem:[%s1 + $0x90] sm:$0xff]
  %v36 = vld [vmem:[%s1 + $0x98] sm:$0xff]
  %v37 = vld [vmem:[%s1 + $0xa0] sm:$0xff]
  %v38 = vld [vmem:[%s1 + $0xa8] sm:$0xff]
  %v39 = vld [vmem:[%s1 + $0xb0] sm:$0xff]
  %v40 = vld [vmem:[%s1 + $0xb8] sm:$0xff]
  %v41 = vld [vmem:[%s1 + $0xc0] sm:$0xff]
  %v42 = vld [vmem:[%s1 + $0xc8] sm:$0xff]
  %v43 = vld [vmem:[%s1 + $0xd0] sm:$0xff]
  %v44 = vld [vmem:[%s1 + $0xd8] sm:$0xff]
  %v45 = vld [vmem:[%s1 + $0xe0] sm:$0xff]
  %v46 = vld [vmem:[%s1 + $0xe8] sm:$0xff]
  %v47 = vld [vmem:[%s1 + $0xf0] sm:$0xff]
  %v48 = vld [vmem:[%s1 + $0xf8] sm:$0xff]
  %v49 = vpack.c.bf16 %v19, %v17
  %v50 = vpack.c.bf16 %v20, %v18
  %v51 = vpack.c.bf16 %v23, %v21
  %v52 = vpack.c.bf16 %v24, %v22
  %v53 = vpack.c.bf16 %v27, %v25
  %v54 = vpack.c.bf16 %v28, %v26
  %v55 = vpack.c.bf16 %v31, %v29
  %v56 = vpack.c.bf16 %v32, %v30
  %v57 = vpack.c.bf16 %v35, %v33
  %v58 = vpack.c.bf16 %v36, %v34
  %v59 = vpack.c.bf16 %v39, %v37
  %v60 = vpack.c.bf16 %v40, %v38
  %v61 = vpack.c.bf16 %v43, %v41
  %v62 = vpack.c.bf16 %v44, %v42
  %v63 = vpack.c.bf16 %v47, %v45
  %v64 = vpack.c.bf16 %v48, %v46
  %65 = vmatprep.subr.bf16.mxu0 %v64
  %66 = vmatpush1.bf16.msra.mxu0 %v63
  %67 = vmatprep.subr.bf16.mxu0 %v62
  %68 = vmatpush1.bf16.msra.mxu0 %v61
  %69 = vmatprep.subr.bf16.mxu0 %v60
  %70 = vmatpush1.bf16.msra.mxu0 %v59
  %71 = vmatprep.subr.bf16.mxu0 %v58
  %72 = vmatpush1.bf16.msra.mxu0 %v57
  %73 = vmatprep.subr.bf16.mxu0 %v56
  %74 = vmatpush1.bf16.msra.mxu0 %v55
  %75 = vmatprep.subr.bf16.mxu0 %v54
  %76 = vmatpush1.bf16.msra.mxu0 %v53
  %77 = vmatprep.subr.bf16.mxu0 %v52
  %78 = vmatpush1.bf16.msra.mxu0 %v51
  %79 = vmatprep.subr.bf16.mxu0 %v50
  %80 = vmatpush1.bf16.msra.mxu0 %v49
  %81 = vmatprep.subr.bf16.mxu0 0
  %82 = vmatpush2.bf16.msra.mxu0 0
  %83 = vmatprep.subr.bf16.mxu0 0
  %84 = vmatpush2.bf16.msra.mxu0 0
  %85 = vmatprep.subr.bf16.mxu0 0
  %86 = vmatpush2.bf16.msra.mxu0 0
  %87 = vmatprep.subr.bf16.mxu0 0
  %88 = vmatpush2.bf16.msra.mxu0 0
  %89 = vmatprep.subr.bf16.mxu0 0
  %90 = vmatpush2.bf16.msra.mxu0 0
  %91 = vmatprep.subr.bf16.mxu0 0
  %92 = vmatpush2.bf16.msra.mxu0 0
  %93 = vmatprep.subr.bf16.mxu0 0
  %94 = vmatpush2.bf16.msra.mxu0 0
  %95 = vmatprep.subr.bf16.mxu0 0
  %96 = vmatpush2.bf16.msra.mxu0 0
  %97 = vmatprep.mubr.bf16.mxu0 0
  %98 = vmatmul.mubr.bf16.gmra.mxu0 %v16
  %v99 = vpop.f32.mrf.mxu0
  %v100 = vadd.f32 0.0, %v99
  %v101 = vpop.f32.mrf.mxu0
  %v102 = vadd.f32 0.0, %v101
  %v103 = vpop.f32.mrf.mxu0
  %v104 = vadd.f32 0.0, %v103
  %v105 = vpop.f32.mrf.mxu0
  %v106 = vadd.f32 0.0, %v105
  %107 = vdwg.mxu0
  %p108 = scmp.eq.s32.totalorder 0, 0
  // Predicated region
  $region10: #{full_model_forward.2} parent=0 // pred_check
    %p109 = pneg %p108
  $region11: #{full_model_forward.2} parent=0 // pred_check_branch
    %111 = sbr.rel (%p109) target = $region13
  $region12: #{full_model_forward.2} parent=0 // pred_region
    %112 = vst [vmem:[%s2] sm:$0xff] %v100
    %113 = vst [vmem:[%s2 + $0x8] sm:$0xff] %v102
    %114 = vst [vmem:[%s2 + $0x10] sm:$0xff] %v104
    %115 = vst [vmem:[%s2 + $0x18] sm:$0xff] %v106
  $region13: #{full_model_forward.2} parent=0 // pred_fallthru
    _
  %p116 = scmp.gt.s32.totalorder 0, 0
  // Predicated region
  $region14: #{full_model_forward.2} parent=0 // pred_check
    %p117 = pneg %p116
  $region15: #{full_model_forward.2} parent=0 // pred_check_branch
    %119 = sbr.rel (%p117) target = $region17
  $region16: #{full_model_forward.2} parent=0 // pred_region
    %v120 = vld [vmem:[%s2] sm:$0xff]
    %v121 = vld [vmem:[%s2 + $0x8] sm:$0xff]
    %v122 = vld [vmem:[%s2 + $0x10] sm:$0xff]
    %v123 = vld [vmem:[%s2 + $0x18] sm:$0xff]
    %v124 = vadd.f32 %v120, %v100
    %v125 = vadd.f32 %v121, %v102
    %v126 = vadd.f32 %v122, %v104
    %v127 = vadd.f32 %v123, %v106
    %128 = vst [vmem:[%s2] sm:$0xff] %v124
    %129 = vst [vmem:[%s2 + $0x8] sm:$0xff] %v125
    %130 = vst [vmem:[%s2 + $0x10] sm:$0xff] %v126
    %131 = vst [vmem:[%s2 + $0x18] sm:$0xff] %v127
  $region17: #{full_model_forward.2} parent=0 // pred_fallthru
    _
  // Predicated region
  $region18: #{full_model_forward.2} parent=0 // pred_check
    %p132 = pneg %p108
  $region19: #{full_model_forward.2} parent=0 // pred_check_branch
    %134 = sbr.rel (%p132) target = $region21
  $region20: #{full_model_forward.2} parent=0 // pred_region
    %v135 = vld [vmem:[%s2] sm:$0xff]
    %v136 = vld [vmem:[%s2 + $0x8] sm:$0xff]
    %v137 = vld [vmem:[%s2 + $0x10] sm:$0xff]
    %v138 = vld [vmem:[%s2 + $0x18] sm:$0xff]
    %v139 = vadd.f32 %v135, %v137
    %v140 = vrot.slane %v139, 4
    %v141 = vadd.f32 %v139, %v140
    %v142 = vrot.slane %v141, 2
    %v143 = vadd.f32 %v141, %v142
    %v144 = vrot.slane %v143, 1
    %v145 = vadd.f32 %v143, %v144
    %v146 = vadd.f32 %v136, %v138
    %v147 = vrot.slane %v146, 4
    %v148 = vadd.f32 %v146, %v147
    %v149 = vrot.slane %v148, 2
    %v150 = vadd.f32 %v148, %v149
    %v151 = vrot.slane %v150, 1
    %v152 = vadd.f32 %v150, %v151
    %v155 = vcombine.low %v145, %v152
    %v157 = vunpack.c.l.s4 1966171168
    %v158 = vunpack.c.0.s8 %v157
    %v159 = vlaneseq
    %v160 = vshrl.u32 %v159, 7
    %v161 = vsub.s32 %v158, %v160
    %v162 = vrot.slane %v155, %v161
    %v164 = vunpack.c.l.s4 1966171168
    %v165 = vunpack.c.0.s8 %v164
    %v166 = vlaneseq
    %v167 = vshrl.u32 %v166, 7
    %v168 = vsub.s32 %v165, %v167
    %v169 = vrot.slane %v162, %v168
    %v171 = vlaneseq
    %vm172 = vcmp.ge.s32.totalorder %v171, 0
    %vm173 = vcmp.lt.s32.totalorder %v171, 256
    %vm174 = vmand %vm172, %vm173
    %175 = vst.msk [vmem:[%s3] ss:$2 sm:$0x3] %vm174, %v169
    %v176 = vmul.f32 %v135, %v135
    %v177 = vmul.f32 %v136, %v136
    %v178 = vmul.f32 %v137, %v137
    %v179 = vmul.f32 %v138, %v138
    %v180 = vadd.f32 %v176, %v178
    %v181 = vrot.slane %v180, 4
    %v182 = vadd.f32 %v180, %v181
    %v183 = vrot.slane %v182, 2
    %v184 = vadd.f32 %v182, %v183
    %v185 = vrot.slane %v184, 1
    %v186 = vadd.f32 %v184, %v185
    %v187 = vadd.f32 %v177, %v179
    %v188 = vrot.slane %v187, 4
    %v189 = vadd.f32 %v187, %v188
    %v190 = vrot.slane %v189, 2
    %v191 = vadd.f32 %v189, %v190
    %v192 = vrot.slane %v191, 1
    %v193 = vadd.f32 %v191, %v192
    %v196 = vcombine.low %v186, %v193
    %v198 = vunpack.c.l.s4 1966171168
    %v199 = vunpack.c.0.s8 %v198
    %v200 = vlaneseq
    %v201 = vshrl.u32 %v200, 7
    %v202 = vsub.s32 %v199, %v201
    %v203 = vrot.slane %v196, %v202
    %v205 = vunpack.c.l.s4 1966171168
    %v206 = vunpack.c.0.s8 %v205
    %v207 = vlaneseq
    %v208 = vshrl.u32 %v207, 7
    %v209 = vsub.s32 %v206, %v208
    %v210 = vrot.slane %v203, %v209
    %s212 = scalar_lea.vmem %s3, 1
    %213 = vst.msk [vmem:[%s212] ss:$2 sm:$0x3] %vm174, %v210
  $region21: #{full_model_forward.2} parent=0 // pred_fallthru
    _
  // Predicated region
  $region22: #{full_model_forward.2} parent=0 // pred_check
    _
  $region23: #{full_model_forward.2} parent=0 // pred_check_branch
    %215 = sbr.rel (0) target = $region25
  $region24: #{full_model_forward.2} parent=0 // pred_region
    _
  $region25: #{full_model_forward.2} parent=0 // pred_fallthru
    _
  // Predicated region
  $region26: #{full_model_forward.2} parent=0 // pred_check
    _
  $region27: #{full_model_forward.2} parent=0 // pred_check_branch
    %217 = sbr.rel (0) target = $region29
  $region28: #{full_model_forward.2} parent=0 // pred_region
    _
  $region29: #{full_model_forward.2} parent=0 // pred_fallthru
    _
  // Predicated region
  $region30: #{full_model_forward.2} parent=0 // pred_check
    _
  $region31: #{full_model_forward.2} parent=0 // pred_check_branch
    %219 = sbr.rel (0) target = $region33
  $region32: #{full_model_forward.2} parent=0 // pred_region
    _
  $region33: #{full_model_forward.2} parent=0 // pred_fallthru
    _
  // Predicated region
  $region34: #{full_model_forward.2} parent=0 // pred_check
    _
  $region35: #{full_model_forward.2} parent=0 // pred_check_branch
    %221 = sbr.rel (0) target = $region37
  $region36: #{full_model_forward.2} parent=0 // pred_region
    _
  $region37: #{full_model_forward.2} parent=0 // pred_fallthru
    _

// kernel: full_model_forward.3
$region0: #{full_model_forward.3}
  #allocation0 [shape = 'u32[]', space=smem, size = 0x4, offset = 0x4, fixed_abs, tag = 'smem constant byte address 0x4 - core index']
  #allocation1 [shape = 'u32[144,128]{1,0:T(1,128)}', space=vmem, size = 0x12000, scoped, tag = 'internal scratch']
  %s0 = inlined_call_operand.vmem [shape: f32[16,256], index: 0, kind: input, shape index: {}]
  %s1 = inlined_call_operand.vmem [shape: f32[1,2,256], index: 1, kind: input, shape index: {}]
  %s2 = inlined_call_operand.vmem [shape: f32[2,256], index: 2, kind: input, shape index: {}]
  %s3 = inlined_call_operand.vmem [shape: bf16[256,256], index: 3, kind: input, shape index: {}]
  %s4 = inlined_call_operand.vmem [shape: bf16[1,256], index: 4, kind: input, shape index: {}]
  %s5 = inlined_call_operand.vmem [shape: f32[16,256], index: 5, kind: output, shape index: {0}]
  %s6 = inlined_call_operand.vmem [shape: f32[1,8,16], index: 6, kind: output, shape index: {1}]
  %7 = xla_tuple %s5, %s6
  %s8 = sld [smem:[#allocation0]]
  $region38: #{full_model_forward.3} parent=0
    _
  %s10 = ssub.s32 1, %s8
  %s11 = scalar_select 0, %s10, %s8
  // Predicated region
  $region2: #{full_model_forward.3} parent=0 // pred_check
    _
  $region3: #{full_model_forward.3} parent=0 // pred_check_branch
    %13 = sbr.rel (0) target = $region5
  $region4: #{full_model_forward.3} parent=0 // pred_region
    _
  $region5: #{full_model_forward.3} parent=0 // pred_fallthru
    _
  // Predicated region
  $region6: #{full_model_forward.3} parent=0 // pred_check
    _
  $region7: #{full_model_forward.3} parent=0 // pred_check_branch
    %15 = sbr.rel (0) target = $region9
  $region8: #{full_model_forward.3} parent=0 // pred_region
    _
  $region9: #{full_model_forward.3} parent=0 // pred_fallthru
    _
  // Predicated region
  $region10: #{full_model_forward.3} parent=0 // pred_check
    _
  $region11: #{full_model_forward.3} parent=0 // pred_check_branch
    %17 = sbr.rel (0) target = $region13
  $region12: #{full_model_forward.3} parent=0 // pred_region
    _
  $region13: #{full_model_forward.3} parent=0 // pred_fallthru
    _
  // Predicated region
  $region14: #{full_model_forward.3} parent=0 // pred_check
    _
  $region15: #{full_model_forward.3} parent=0 // pred_check_branch
    %19 = sbr.rel (0) target = $region17
  $region16: #{full_model_forward.3} parent=0 // pred_region
    _
  $region17: #{full_model_forward.3} parent=0 // pred_fallthru
    _
  // Predicated region
  $region18: #{full_model_forward.3} parent=0 // pred_check
    _
  $region19: #{full_model_forward.3} parent=0 // pred_check_branch
    %21 = sbr.rel (0) target = $region21
  $region20: #{full_model_forward.3} parent=0 // pred_region
    _
  $region21: #{full_model_forward.3} parent=0 // pred_fallthru
    _
  %v23 = vld [vmem:[%s1] sm:$0xf]
  %v24 = vadd.f32 %v23, 0.0
  %v25 = vmul.f32 %v24, 0.125
  %v26 = vmul.f32 %v25, %v25
  %v28 = vrot.slane %v26, 7
  %v30 = vsub.f32 %v25, %v28
  %v31 = vmax.f32 %v30, 0.0
  %v32 = vld [vmem:[%s2] ss:$2 sm:$0x3]
  %v33 = vadd.f32 %v31, 1e-05
  %v34 = vrsqrt.pop %v33
  %v37 = vunpack.c.l.s4 1966171168
  %v38 = vunpack.c.0.s8 %v37
  %v39 = vlaneseq
  %v40 = vshrl.u32 %v39, 7
  %v41 = vsub.s32 %v38, %v40
  %v42 = vrot.slane %v34, %v41
  %v43 = vcombine.high %v42, %v42
  %v45 = vmul.f32 %v32, %v43
  %s46 = scalar_lea.vmem %s2, 1
  %v47 = vld [vmem:[%s46] ss:$2 sm:$0x3]
  %v50 = vunpack.c.l.s4 857870592
  %v51 = vunpack.c.0.s8 %v50
  %v52 = vlaneseq
  %v53 = vshrl.u32 %v52, 7
  %v54 = vsub.s32 %v51, %v53
  %v55 = vrot.slane %v45, %v54
  %v57 = vmul.f32 %v25, %v55
  %v60 = vunpack.c.l.s4 1966171168
  %v61 = vunpack.c.0.s8 %v60
  %v62 = vlaneseq
  %v63 = vshrl.u32 %v62, 7
  %v64 = vsub.s32 %v61, %v63
  %v65 = vrot.slane %v57, %v64
  %v67 = vsub.f32 %v47, %v65
  %v68 = vld [vmem:[%s0] sm:$0xff]
  %v69 = vld [vmem:[%s0 + $0x8] sm:$0xff]
  %v70 = vld [vmem:[%s0 + $0x10] sm:$0xff]
  %v71 = vld [vmem:[%s0 + $0x18] sm:$0xff]
  %v72 = vlaneseq
  %v73 = vshrl.u32 %v72, 7
  %v74 = vsub.s32 0, %v73
  %v75 = vrot.slane %v45, %v74
  %v76 = vlaneseq
  %v77 = vshrl.u32 %v76, 7
  %v78 = vsub.s32 1, %v77
  %v79 = vrot.slane %v45, %v78
  %v82 = vmul.f32 %v68, %v75
  %v83 = vmul.f32 %v69, %v79
  %v84 = vmul.f32 %v70, %v75
  %v85 = vmul.f32 %v71, %v79
  %v87 = vlaneseq
  %v88 = vshrl.u32 %v87, 7
  %v89 = vsub.s32 0, %v88
  %v90 = vrot.slane %v67, %v89
  %v91 = vlaneseq
  %v92 = vshrl.u32 %v91, 7
  %v93 = vsub.s32 1, %v92
  %v94 = vrot.slane %v67, %v93
  %v97 = vadd.f32 %v82, %v90
  %v98 = vadd.f32 %v83, %v94
  %v99 = vadd.f32 %v84, %v90
  %v100 = vadd.f32 %v85, %v94
  %v101 = vmax.f32 %v97, 0.0
  %v102 = vmax.f32 %v98, 0.0
  %v103 = vmax.f32 %v99, 0.0
  %v104 = vmax.f32 %v100, 0.0
  %v105 = vpack.c.bf16 %v103, %v101
  %v106 = vpack.c.bf16 %v104, %v102
  %v107 = vld [vmem:[%s3] sm:$0xff]
  %v108 = vld [vmem:[%s3 + $0x8] sm:$0xff]
  %v109 = vld [vmem:[%s3 + $0x10] sm:$0xff]
  %v110 = vld [vmem:[%s3 + $0x18] sm:$0xff]
  %v111 = vld [vmem:[%s3 + $0x20] sm:$0xff]
  %v112 = vld [vmem:[%s3 + $0x28] sm:$0xff]
  %v113 = vld [vmem:[%s3 + $0x30] sm:$0xff]
  %v114 = vld [vmem:[%s3 + $0x38] sm:$0xff]
  %v115 = vld [vmem:[%s3 + $0x40] sm:$0xff]
  %v116 = vld [vmem:[%s3 + $0x48] sm:$0xff]
  %v117 = vld [vmem:[%s3 + $0x50] sm:$0xff]
  %v118 = vld [vmem:[%s3 + $0x58] sm:$0xff]
  %v119 = vld [vmem:[%s3 + $0x60] sm:$0xff]
  %v120 = vld [vmem:[%s3 + $0x68] sm:$0xff]
  %v121 = vld [vmem:[%s3 + $0x70] sm:$0xff]
  %v122 = vld [vmem:[%s3 + $0x78] sm:$0xff]
  %v123 = vld [vmem:[%s3 + $0x80] sm:$0xff]
  %v124 = vld [vmem:[%s3 + $0x88] sm:$0xff]
  %v125 = vld [vmem:[%s3 + $0x90] sm:$0xff]
  %v126 = vld [vmem:[%s3 + $0x98] sm:$0xff]
  %v127 = vld [vmem:[%s3 + $0xa0] sm:$0xff]
  %v128 = vld [vmem:[%s3 + $0xa8] sm:$0xff]
  %v129 = vld [vmem:[%s3 + $0xb0] sm:$0xff]
  %v130 = vld [vmem:[%s3 + $0xb8] sm:$0xff]
  %v131 = vld [vmem:[%s3 + $0xc0] sm:$0xff]
  %v132 = vld [vmem:[%s3 + $0xc8] sm:$0xff]
  %v133 = vld [vmem:[%s3 + $0xd0] sm:$0xff]
  %v134 = vld [vmem:[%s3 + $0xd8] sm:$0xff]
  %v135 = vld [vmem:[%s3 + $0xe0] sm:$0xff]
  %v136 = vld [vmem:[%s3 + $0xe8] sm:$0xff]
  %v137 = vld [vmem:[%s3 + $0xf0] sm:$0xff]
  %v138 = vld [vmem:[%s3 + $0xf8] sm:$0xff]
  %v171 = vunpack.c.l.b16 %v107
  %v172 = vunpack.c.h.b16 %v107
  %v173 = vunpack.c.l.b16 %v108
  %v174 = vunpack.c.h.b16 %v108
  %v175 = vunpack.c.l.b16 %v109
  %v176 = vunpack.c.h.b16 %v109
  %v177 = vunpack.c.l.b16 %v110
  %v178 = vunpack.c.h.b16 %v110
  %v179 = vunpack.c.l.b16 %v111
  %v180 = vunpack.c.h.b16 %v111
  %v181 = vunpack.c.l.b16 %v112
  %v182 = vunpack.c.h.b16 %v112
  %v183 = vunpack.c.l.b16 %v113
  %v184 = vunpack.c.h.b16 %v113
  %v185 = vunpack.c.l.b16 %v114
  %v186 = vunpack.c.h.b16 %v114
  %v187 = vunpack.c.l.b16 %v115
  %v188 = vunpack.c.h.b16 %v115
  %v189 = vunpack.c.l.b16 %v116
  %v190 = vunpack.c.h.b16 %v116
  %v191 = vunpack.c.l.b16 %v117
  %v192 = vunpack.c.h.b16 %v117
  %v193 = vunpack.c.l.b16 %v118
  %v194 = vunpack.c.h.b16 %v118
  %v195 = vunpack.c.l.b16 %v119
  %v196 = vunpack.c.h.b16 %v119
  %v197 = vunpack.c.l.b16 %v120
  %v198 = vunpack.c.h.b16 %v120
  %v199 = vunpack.c.l.b16 %v121
  %v200 = vunpack.c.h.b16 %v121
  %v201 = vunpack.c.l.b16 %v122
  %v202 = vunpack.c.h.b16 %v122
  %v203 = vunpack.c.l.b16 %v123
  %v204 = vunpack.c.h.b16 %v123
  %v205 = vunpack.c.l.b16 %v124
  %v206 = vunpack.c.h.b16 %v124
  %v207 = vunpack.c.l.b16 %v125
  %v208 = vunpack.c.h.b16 %v125
  %v209 = vunpack.c.l.b16 %v126
  %v210 = vunpack.c.h.b16 %v126
  %v211 = vunpack.c.l.b16 %v127
  %v212 = vunpack.c.h.b16 %v127
  %v213 = vunpack.c.l.b16 %v128
  %v214 = vunpack.c.h.b16 %v128
  %v215 = vunpack.c.l.b16 %v129
  %v216 = vunpack.c.h.b16 %v129
  %v217 = vunpack.c.l.b16 %v130
  %v218 = vunpack.c.h.b16 %v130
  %v219 = vunpack.c.l.b16 %v131
  %v220 = vunpack.c.h.b16 %v131
  %v221 = vunpack.c.l.b16 %v132
  %v222 = vunpack.c.h.b16 %v132
  %v223 = vunpack.c.l.b16 %v133
  %v224 = vunpack.c.h.b16 %v133
  %v225 = vunpack.c.l.b16 %v134
  %v226 = vunpack.c.h.b16 %v134
  %v227 = vunpack.c.l.b16 %v135
  %v228 = vunpack.c.h.b16 %v135
  %v229 = vunpack.c.l.b16 %v136
  %v230 = vunpack.c.h.b16 %v136
  %v231 = vunpack.c.l.b16 %v137
  %v232 = vunpack.c.h.b16 %v137
  %v233 = vunpack.c.l.b16 %v138
  %v234 = vunpack.c.h.b16 %v138
  %v235 = vpack.c.b16 %v173, %v171
  %v236 = vpack.c.b16 %v174, %v172
  %v237 = vpack.c.b16 %v177, %v175
  %v238 = vpack.c.b16 %v178, %v176
  %v239 = vpack.c.b16 %v181, %v179
  %v240 = vpack.c.b16 %v182, %v180
  %v241 = vpack.c.b16 %v185, %v183
  %v242 = vpack.c.b16 %v186, %v184
  %v243 = vpack.c.b16 %v189, %v187
  %v244 = vpack.c.b16 %v190, %v188
  %v245 = vpack.c.b16 %v193, %v191
  %v246 = vpack.c.b16 %v194, %v192
  %v247 = vpack.c.b16 %v197, %v195
  %v248 = vpack.c.b16 %v198, %v196
  %v249 = vpack.c.b16 %v201, %v199
  %v250 = vpack.c.b16 %v202, %v200
  %v251 = vpack.c.b16 %v205, %v203
  %v252 = vpack.c.b16 %v206, %v204
  %v253 = vpack.c.b16 %v209, %v207
  %v254 = vpack.c.b16 %v210, %v208
  %v255 = vpack.c.b16 %v213, %v211
  %v256 = vpack.c.b16 %v214, %v212
  %v257 = vpack.c.b16 %v217, %v215
  %v258 = vpack.c.b16 %v218, %v216
  %v259 = vpack.c.b16 %v221, %v219
  %v260 = vpack.c.b16 %v222, %v220
  %v261 = vpack.c.b16 %v225, %v223
  %v262 = vpack.c.b16 %v226, %v224
  %v263 = vpack.c.b16 %v229, %v227
  %v264 = vpack.c.b16 %v230, %v228
  %v265 = vpack.c.b16 %v233, %v231
  %v266 = vpack.c.b16 %v234, %v232
  %299 = vmatprep.subr.bf16.mxu0 %v250
  %300 = vmatpush1.bf16.msra.mxu0 %v249
  %301 = vmatprep.subr.bf16.mxu0 %v248
  %302 = vmatpush1.bf16.msra.mxu0 %v247
  %303 = vmatprep.subr.bf16.mxu0 %v246
  %304 = vmatpush1.bf16.msra.mxu0 %v245
  %305 = vmatprep.subr.bf16.mxu0 %v244
  %306 = vmatpush1.bf16.msra.mxu0 %v243
  %307 = vmatprep.subr.bf16.mxu0 %v242
  %308 = vmatpush1.bf16.msra.mxu0 %v241
  %309 = vmatprep.subr.bf16.mxu0 %v240
  %310 = vmatpush1.bf16.msra.mxu0 %v239
  %311 = vmatprep.subr.bf16.mxu0 %v238
  %312 = vmatpush1.bf16.msra.mxu0 %v237
  %313 = vmatprep.subr.bf16.mxu0 %v236
  %314 = vmatpush1.bf16.msra.mxu0 %v235
  %315 = vmatprep.subr.bf16.mxu0 %v266
  %316 = vmatpush2.bf16.msra.mxu0 %v265
  %317 = vmatprep.subr.bf16.mxu0 %v264
  %318 = vmatpush2.bf16.msra.mxu0 %v263
  %319 = vmatprep.subr.bf16.mxu0 %v262
  %320 = vmatpush2.bf16.msra.mxu0 %v261
  %321 = vmatprep.subr.bf16.mxu0 %v260
  %322 = vmatpush2.bf16.msra.mxu0 %v259
  %323 = vmatprep.subr.bf16.mxu0 %v258
  %324 = vmatpush2.bf16.msra.mxu0 %v257
  %325 = vmatprep.subr.bf16.mxu0 %v256
  %326 = vmatpush2.bf16.msra.mxu0 %v255
  %327 = vmatprep.subr.bf16.mxu0 %v254
  %328 = vmatpush2.bf16.msra.mxu0 %v253
  %329 = vmatprep.subr.bf16.mxu0 %v252
  %330 = vmatpush2.bf16.msra.mxu0 %v251
  %331 = vmatprep.mubr.bf16.mxu0 %v106
  %332 = vmatmul.mubr.bf16.gmra.mxu0 %v105
  %v333 = vpop.f32.mrf.mxu0
  %v334 = vadd.f32 0.0, %v333
  %v335 = vpop.f32.mrf.mxu0
  %v336 = vadd.f32 0.0, %v335
  %v337 = vpop.f32.mrf.mxu0
  %v338 = vadd.f32 0.0, %v337
  %v339 = vpop.f32.mrf.mxu0
  %v340 = vadd.f32 0.0, %v339
  %341 = vdwg.mxu0
  %342 = vst [vmem:[%s5] sm:$0xff] %v334
  %343 = vst [vmem:[%s5 + $0x8] sm:$0xff] %v336
  %344 = vst [vmem:[%s5 + $0x10] sm:$0xff] %v338
  %345 = vst [vmem:[%s5 + $0x18] sm:$0xff] %v340
  %v346 = vld [vmem:[%s4] sm:$0x3]
  %v349 = vunpack.c.l.s4 1966171168
  %v350 = vunpack.c.0.s8 %v349
  %v351 = vlaneseq
  %v352 = vshrl.u32 %v351, 7
  %v353 = vsub.s32 %v350, %v352
  %v354 = vrot.slane %v346, %v353
  %v355 = vcombine.high %v354, %v354
  %v357 = vunpack.c.l.s4 1966171168
  %v358 = vunpack.c.0.s8 %v357
  %v359 = vlaneseq
  %v360 = vshrl.u32 %v359, 7
  %v361 = vsub.s32 %v358, %v360
  %v362 = vrot.slane %v354, %v361
  %v364 = vunpack.c.l.s4 1966171168
  %v365 = vunpack.c.0.s8 %v364
  %v366 = vlaneseq
  %v367 = vshrl.u32 %v366, 7
  %v368 = vsub.s32 %v365, %v367
  %v369 = vrot.slane %v355, %v368
  %372 = vmatprep.subr.bf16.mxu0 0
  %373 = vmatpush1.bf16.xpose.msra.mxu0 0
  %374 = vmatprep.subr.bf16.mxu0 0
  %375 = vmatpush1.bf16.xpose.msra.mxu0 0
  %376 = vmatprep.subr.bf16.mxu0 0
  %377 = vmatpush1.bf16.xpose.msra.mxu0 0
  %378 = vmatprep.subr.bf16.mxu0 0
  %379 = vmatpush1.bf16.xpose.msra.mxu0 0
  %380 = vmatprep.subr.bf16.mxu0 0
  %381 = vmatpush1.bf16.xpose.msra.mxu0 0
  %382 = vmatprep.subr.bf16.mxu0 0
  %383 = vmatpush1.bf16.xpose.msra.mxu0 0
  %384 = vmatprep.subr.bf16.mxu0 0
  %385 = vmatpush1.bf16.xpose.msra.mxu0 0
  %386 = vmatprep.subr.bf16.mxu0 %v106
  %387 = vmatpush1.bf16.xpose.msra.mxu0 %v105
  %388 = vmatprep.subr.bf16.mxu0 0
  %389 = vmatpush2.bf16.xpose.msra.mxu0 0
  %390 = vmatprep.subr.bf16.mxu0 0
  %391 = vmatpush2.bf16.xpose.msra.mxu0 0
  %392 = vmatprep.subr.bf16.mxu0 0
  %393 = vmatpush2.bf16.xpose.msra.mxu0 0
  %394 = vmatprep.subr.bf16.mxu0 0
  %395 = vmatpush2.bf16.xpose.msra.mxu0 0
  %396 = vmatprep.subr.bf16.mxu0 0
  %397 = vmatpush2.bf16.xpose.msra.mxu0 0
  %398 = vmatprep.subr.bf16.mxu0 0
  %399 = vmatpush2.bf16.xpose.msra.mxu0 0
  %400 = vmatprep.subr.bf16.mxu0 0
  %401 = vmatpush2.bf16.xpose.msra.mxu0 0
  %402 = vmatprep.subr.bf16.mxu0 0
  %403 = vmatpush2.bf16.xpose.msra.mxu0 0
  %404 = vmatprep.mubr.bf16.mxu0 %v369
  %405 = vmatmul.mubr.bf16.gmra.mxu0 %v362
  %v406 = vpop.f32.mrf.mxu0
  %v407 = vadd.f32 0.0, %v406
  %v408 = vpop.f32.mrf.mxu0
  %v409 = vpop.f32.mrf.mxu0
  %v410 = vpop.f32.mrf.mxu0
  %411 = vdwg.mxu0
  %v412 = vlaneseq
  %v413 = vshrl.u32 %v412, 7
  %v414 = vsub.s32 0, %v413
  %v415 = vrot.slane %v407, %v414
  %vm416 = vcmask 130048
  %417 = vst.msk [vmem:[%s6] sm:$0xff] %vm416, %v415
  // Predicated region
  $region22: #{full_model_forward.3} parent=0 // pred_check
    _
  $region23: #{full_model_forward.3} parent=0 // pred_check_branch
    %419 = sbr.rel (0) target = $region25
  $region24: #{full_model_forward.3} parent=0 // pred_region
    _
  $region25: #{full_model_forward.3} parent=0 // pred_fallthru
    _
  // Predicated region
  $region26: #{full_model_forward.3} parent=0 // pred_check
    _
  $region27: #{full_model_forward.3} parent=0 // pred_check_branch
    %421 = sbr.rel (0) target = $region29
  $region28: #{full_model_forward.3} parent=0 // pred_region
    _
  $region29: #{full_model_forward.3} parent=0 // pred_fallthru
    _
  // Predicated region
  $region30: #{full_model_forward.3} parent=0 // pred_check
    _
  $region31: #{full_model_forward.3} parent=0 // pred_check_branch
    %423 = sbr.rel (0) target = $region33
  $region32: #{full_model_forward.3} parent=0 // pred_region
    _
  $region33: #{full_model_forward.3} parent=0 // pred_fallthru
    _
  // Predicated region
  $region34: #{full_model_forward.3} parent=0 // pred_check
    _
  $region35: #{full_model_forward.3} parent=0 // pred_check_branch
    %425 = sbr.rel (0) target = $region37
  $region36: #{full_model_forward.3} parent=0 // pred_region
    _
  $region37: #{full_model_forward.3} parent=0 // pred_fallthru
    _

</llo_original>
